<compile_context>
chip_gen: v7x
topology: tpu7x:2x2x1
jax: 0.10.0
libtpu: 0.0.40
codegen_flags: <defaults>
</compile_context>

<pallas_src>
import functools

import jax
import jax.numpy as jnp
from jax.experimental import pallas as pl
from jax.experimental.pallas import tpu as pltpu

# ----- model / quantization hyper-parameters (synthetic, deterministic) -----
HIDDEN = 128          # output features of dense / LayerNorm dim (lane-dense: 1 full lane group)
INTERMEDIATE = 512    # input features of dense (BERT-like 4x ratio)
LN_EPS = 1e-12        # BERT layer_norm_eps
FQ_SCALE = 0.05       # fake-quant per-tensor scale
FQ_INV_SCALE = 1.0 / FQ_SCALE
FQ_ZERO_POINT = 0.0   # fake-quant zero point
FQ_QMIN = -128.0      # qint8 range
FQ_QMAX = 127.0
# TODO(synk): dropout is identity here (eval mode); training-mode stochastic dropout not emitted.
# NOTE: for bf16 inference on v6e/v7x, cast x/w/residual to bf16 in the wrapper and keep
#       preferred_element_type=jnp.float32; kept f32 here to match the float PyTorch module.


def _round_up(x, m):
    return -(-x // m) * m


def _bert_output_kernel(x_ref, w_ref, res_ref, params_ref, o_ref):
    # dense: (tm, K) @ (K, N) on the MXU, accumulate in f32
    h = jnp.dot(x_ref[...], w_ref[...], preferred_element_type=jnp.float32)

    bias = params_ref[0:1, :]   # (1, N)
    gamma = params_ref[1:2, :]  # (1, N)
    beta = params_ref[2:3, :]   # (1, N)

    h = h + bias
    # dropout (eval) -> identity
    h = h + res_ref[...].astype(jnp.float32)   # residual add

    # fake quantize (per-tensor affine, qint8), torch semantics:
    #   q  = clip(round(h / scale + zp), qmin, qmax)
    #   dq = (q - zp) * scale
    # zero point applied BEFORE rounding; divide replaced by multiply-by-inverse.
    q = jnp.clip(jnp.round(h * FQ_INV_SCALE + FQ_ZERO_POINT), FQ_QMIN, FQ_QMAX)
    h = (q - FQ_ZERO_POINT) * FQ_SCALE

    # LayerNorm over last dim (biased variance, like torch.nn.LayerNorm)
    mean = jnp.mean(h, axis=-1, keepdims=True)
    centered = h - mean
    var = jnp.mean(centered * centered, axis=-1, keepdims=True)
    normed = centered * jax.lax.rsqrt(var + LN_EPS)
    o_ref[...] = (normed * gamma + beta).astype(o_ref.dtype)


@functools.partial(jax.jit, static_argnames=("tm",))
def qaware_bert_output(hidden_states, input_tensor, w, b, gamma, beta, *, tm=512):
    """hidden_states: [B, S, INTERMEDIATE], input_tensor: [B, S, HIDDEN] -> [B, S, HIDDEN]."""
    B, S, K = hidden_states.shape
    N = input_tensor.shape[-1]
    M = B * S

    x2d = hidden_states.reshape(M, K)
    res2d = input_tensor.reshape(M, N)

    # Adaptive tile: big (default 512 rows) when M is large, clamped (to a multiple of 8
    # sublanes) when M is small. Pad M up to a multiple of the tile so every output row
    # is covered by the grid (no dropped partial tiles); padded rows are sliced off below.
    tm_eff = min(tm, _round_up(M, 8))
    m_pad = _round_up(M, tm_eff)
    if m_pad != M:
        x2d = jnp.pad(x2d, ((0, m_pad - M), (0, 0)))
        res2d = jnp.pad(res2d, ((0, m_pad - M), (0, 0)))

    # Pack the three per-feature parameter vectors into one resident (3, N) block.
    params = jnp.stack(
        [b.astype(jnp.float32), gamma.astype(jnp.float32), beta.astype(jnp.float32)], axis=0
    )

    grid = (pl.cdiv(m_pad, tm_eff),)  # exact: m_pad is a multiple of tm_eff

    out2d = pl.pallas_call(
        _bert_output_kernel,
        out_shape=jax.ShapeDtypeStruct((m_pad, N), hidden_states.dtype),
        grid_spec=pltpu.PrefetchScalarGridSpec(
            num_scalar_prefetch=0,
            grid=grid,
            in_specs=[
                pl.BlockSpec((tm_eff, K), lambda i: (i, 0)),   # hidden_states tile
                pl.BlockSpec((K, N), lambda i: (0, 0)),        # dense weight (resident)
                pl.BlockSpec((tm_eff, N), lambda i: (i, 0)),   # residual tile
                pl.BlockSpec((3, N), lambda i: (0, 0)),        # packed bias/gamma/beta
            ],
            out_specs=pl.BlockSpec((tm_eff, N), lambda i: (i, 0)),
        ),
        compiler_params=pltpu.CompilerParams(
            dimension_semantics=("parallel",),      # shards rows across TCs on v7x
            vmem_limit_bytes=48 * 1024 * 1024,      # comfortably under v7x's 64 MiB VMEM
        ),
    )(x2d, w, res2d, params)

    return out2d[:M].reshape(B, S, N)


def _reference(hidden_states, input_tensor, w, b, gamma, beta):
    h = jnp.einsum("bsk,kn->bsn", hidden_states, w) + b
    h = h + input_tensor
    q = jnp.clip(jnp.round(h * FQ_INV_SCALE + FQ_ZERO_POINT), FQ_QMIN, FQ_QMAX)
    h = (q - FQ_ZERO_POINT) * FQ_SCALE
    mean = jnp.mean(h, axis=-1, keepdims=True)
    var = jnp.mean((h - mean) ** 2, axis=-1, keepdims=True)
    return (h - mean) * jax.lax.rsqrt(var + LN_EPS) * gamma + beta


def _check(out, ref):
    # The fake-quant round() can land exactly on a bucket boundary where the Pallas MXU
    # matmul and the XLA reference matmul differ in the last few ulps; tolerate a tiny
    # number of single-bucket flips (each ~FQ_SCALE/row_std after LayerNorm), nothing larger.
    diff = jnp.abs(out - ref)
    max_diff = float(jnp.max(diff))
    frac_bad = float(jnp.mean((diff > 1e-3).astype(jnp.float32)))
    assert max_diff < 0.1, f"large mismatch vs reference (max diff {max_diff})"
    assert frac_bad < 2e-3, f"too many mismatches vs reference (frac {frac_bad})"


if __name__ == "__main__":
    key = jax.random.PRNGKey(0)
    k_x, k_res, k_w, k_b, k_g, k_beta, k_x2, k_res2 = jax.random.split(key, 8)

    # deterministic parameters (Linear: intermediate -> hidden, stored pre-transposed [K, N])
    w = jax.random.normal(k_w, (INTERMEDIATE, HIDDEN), dtype=jnp.float32) * 0.05
    b = jax.random.normal(k_b, (HIDDEN,), dtype=jnp.float32) * 0.01
    gamma = 1.0 + 0.1 * jax.random.normal(k_g, (HIDDEN,), dtype=jnp.float32)
    beta = 0.1 * jax.random.normal(k_beta, (HIDDEN,), dtype=jnp.float32)

    # --- small shape (single tile) ---
    B, S = 2, 8
    hidden_states = jax.random.normal(k_x, (B, S, INTERMEDIATE), dtype=jnp.float32)
    input_tensor = jax.random.normal(k_res, (B, S, HIDDEN), dtype=jnp.float32)

    out = qaware_bert_output(hidden_states, input_tensor, w, b, gamma, beta)
    out = jax.block_until_ready(out)
    assert out.shape == (B, S, HIDDEN)
    _check(out, _reference(hidden_states, input_tensor, w, b, gamma, beta))

    # --- non-multiple row count exercises the padded multi-tile grid path ---
    B2, S2 = 4, 100   # M = 400, not a multiple of the 128-row tile
    hs2 = jax.random.normal(k_x2, (B2, S2, INTERMEDIATE), dtype=jnp.float32)
    res2 = jax.random.normal(k_res2, (B2, S2, HIDDEN), dtype=jnp.float32)

    out2 = qaware_bert_output(hs2, res2, w, b, gamma, beta, tm=128)
    out2 = jax.block_until_ready(out2)
    assert out2.shape == (B2, S2, HIDDEN)
    _check(out2, _reference(hs2, res2, w, b, gamma, beta))

    print("KERNEL_OK")
</pallas_src>

<mosaic_0001>
module attributes {stable_mosaic.version = 11 : i64} {
  func.func @_bert_output_kernel(%arg0: i32, %arg1: memref<16x512xf32, #tpu.memory_space<vmem>>, %arg2: memref<512x128xf32, #tpu.memory_space<vmem>>, %arg3: memref<16x128xf32, #tpu.memory_space<vmem>>, %arg4: memref<3x128xf32, #tpu.memory_space<vmem>>, %arg5: memref<16x128xf32, #tpu.memory_space<vmem>>) attributes {dimension_semantics = [#tpu.dimension_semantics<parallel>], iteration_bounds = array<i64: 1>, scalar_prefetch = 0 : i64, scratch_operands = 0 : i64, tpu.core_type = #tpu.core_type<tc>, window_params = [{transform_indices = @transform_0, window_bounds = array<i64: 16, 512>}, {pipeline_mode = #tpu.pipeline_mode<synchronous>, transform_indices = @transform_1, window_bounds = array<i64: 512, 128>}, {transform_indices = @transform_2, window_bounds = array<i64: 16, 128>}, {pipeline_mode = #tpu.pipeline_mode<synchronous>, transform_indices = @transform_3, window_bounds = array<i64: 3, 128>}, {transform_indices = @transform_4, window_bounds = array<i64: 16, 128>}]} {
    %c0 = arith.constant 0 : index
    %c0_0 = arith.constant 0 : index
    %0 = vector.load %arg1[%c0, %c0_0] : memref<16x512xf32, #tpu.memory_space<vmem>>, vector<16x512xf32>
    %c0_1 = arith.constant 0 : index
    %c0_2 = arith.constant 0 : index
    %1 = vector.load %arg2[%c0_1, %c0_2] : memref<512x128xf32, #tpu.memory_space<vmem>>, vector<512x128xf32>
    %cst = arith.constant dense<0.000000e+00> : vector<16x128xf32>
    %2 = tpu.matmul %0, %1, %cst {dimension_numbers = #tpu.dot_dimension_numbers<[1], [0], [0], [1], [0, 0, 1, 1], [], []>} : vector<16x512xf32>, vector<512x128xf32>, vector<16x128xf32> -> vector<16x128xf32>
    %c0_3 = arith.constant 0 : index
    %c0_4 = arith.constant 0 : index
    %3 = vector.load %arg4[%c0_3, %c0_4] : memref<3x128xf32, #tpu.memory_space<vmem>>, vector<1x128xf32>
    %c1 = arith.constant 1 : index
    %c0_5 = arith.constant 0 : index
    %4 = vector.load %arg4[%c1, %c0_5] : memref<3x128xf32, #tpu.memory_space<vmem>>, vector<1x128xf32>
    %c2 = arith.constant 2 : index
    %c0_6 = arith.constant 0 : index
    %5 = vector.load %arg4[%c2, %c0_6] : memref<3x128xf32, #tpu.memory_space<vmem>>, vector<1x128xf32>
    %6 = vector.broadcast %3 : vector<1x128xf32> to vector<16x128xf32>
    %7 = arith.addf %2, %6 : vector<16x128xf32>
    %c0_7 = arith.constant 0 : index
    %c0_8 = arith.constant 0 : index
    %8 = vector.load %arg3[%c0_7, %c0_8] : memref<16x128xf32, #tpu.memory_space<vmem>>, vector<16x128xf32>
    %9 = arith.addf %7, %8 : vector<16x128xf32>
    %cst_9 = arith.constant 2.000000e+01 : f32
    %10 = vector.broadcast %cst_9 : f32 to vector<16x128xf32>
    %11 = arith.mulf %9, %10 : vector<16x128xf32>
    %cst_10 = arith.constant 0.000000e+00 : f32
    %12 = vector.broadcast %cst_10 : f32 to vector<16x128xf32>
    %13 = arith.addf %11, %12 : vector<16x128xf32>
    %14 = math.roundeven %13 : vector<16x128xf32>
    %cst_11 = arith.constant -1.280000e+02 : f32
    %cst_12 = arith.constant 1.270000e+02 : f32
    %15 = vector.broadcast %cst_11 : f32 to vector<16x128xf32>
    %16 = arith.maximumf %15, %14 : vector<16x128xf32>
    %17 = vector.broadcast %cst_12 : f32 to vector<16x128xf32>
    %18 = arith.minimumf %17, %16 : vector<16x128xf32>
    %cst_13 = arith.constant 0.000000e+00 : f32
    %19 = vector.broadcast %cst_13 : f32 to vector<16x128xf32>
    %20 = arith.subf %18, %19 : vector<16x128xf32>
    %cst_14 = arith.constant 5.000000e-02 : f32
    %21 = vector.broadcast %cst_14 : f32 to vector<16x128xf32>
    %22 = arith.mulf %20, %21 : vector<16x128xf32>
    %cst_15 = arith.constant dense<0.000000e+00> : vector<16xf32>
    %23 = vector.multi_reduction <add>, %22, %cst_15 [1] : vector<16x128xf32> to vector<16xf32>
    %24 = vector.shape_cast %23 : vector<16xf32> to vector<16x1xf32>
    %cst_16 = arith.constant 1.280000e+02 : f32
    %25 = vector.broadcast %cst_16 : f32 to vector<16x1xf32>
    %26 = arith.divf %24, %25 : vector<16x1xf32>
    %27 = vector.broadcast %26 : vector<16x1xf32> to vector<16x128xf32>
    %28 = arith.subf %22, %27 : vector<16x128xf32>
    %29 = arith.mulf %28, %28 : vector<16x128xf32>
    %cst_17 = arith.constant dense<0.000000e+00> : vector<16xf32>
    %30 = vector.multi_reduction <add>, %29, %cst_17 [1] : vector<16x128xf32> to vector<16xf32>
    %31 = vector.shape_cast %30 : vector<16xf32> to vector<16x1xf32>
    %cst_18 = arith.constant 1.280000e+02 : f32
    %32 = vector.broadcast %cst_18 : f32 to vector<16x1xf32>
    %33 = arith.divf %31, %32 : vector<16x1xf32>
    %cst_19 = arith.constant 9.99999996E-13 : f32
    %34 = vector.broadcast %cst_19 : f32 to vector<16x1xf32>
    %35 = arith.addf %33, %34 : vector<16x1xf32>
    %36 = math.rsqrt %35 : vector<16x1xf32>
    %37 = vector.broadcast %36 : vector<16x1xf32> to vector<16x128xf32>
    %38 = arith.mulf %28, %37 : vector<16x128xf32>
    %39 = vector.broadcast %4 : vector<1x128xf32> to vector<16x128xf32>
    %40 = arith.mulf %38, %39 : vector<16x128xf32>
    %41 = vector.broadcast %5 : vector<1x128xf32> to vector<16x128xf32>
    %42 = arith.addf %40, %41 : vector<16x128xf32>
    %c0_20 = arith.constant 0 : index
    %c0_21 = arith.constant 0 : index
    %43 = vector.load %arg5[%c0_20, %c0_21] : memref<16x128xf32, #tpu.memory_space<vmem>>, vector<16x128xf32>
    tpu.vector_store %arg5[%c0_20, %c0_21], %42 {strides = array<i32>} : memref<16x128xf32, #tpu.memory_space<vmem>>, vector<16x128xf32>,
    return
  }
  func.func @transform_0(%arg0: i32) -> (i32, i32) {
    %c0_i32 = arith.constant 0 : i32
    %c0_i32_0 = arith.constant 0 : i32
    return %arg0, %c0_i32 : i32, i32
  }
  func.func @transform_1(%arg0: i32) -> (i32, i32) {
    %c0_i32 = arith.constant 0 : i32
    %c0_i32_0 = arith.constant 0 : i32
    %c0_i32_1 = arith.constant 0 : i32
    return %c0_i32, %c0_i32_0 : i32, i32
  }
  func.func @transform_2(%arg0: i32) -> (i32, i32) {
    %c0_i32 = arith.constant 0 : i32
    %c0_i32_0 = arith.constant 0 : i32
    return %arg0, %c0_i32 : i32, i32
  }
  func.func @transform_3(%arg0: i32) -> (i32, i32) {
    %c0_i32 = arith.constant 0 : i32
    %c0_i32_0 = arith.constant 0 : i32
    %c0_i32_1 = arith.constant 0 : i32
    return %c0_i32, %c0_i32_0 : i32, i32
  }
  func.func @transform_4(%arg0: i32) -> (i32, i32) {
    %c0_i32 = arith.constant 0 : i32
    %c0_i32_0 = arith.constant 0 : i32
    return %arg0, %c0_i32 : i32, i32
  }
}

</mosaic_0001>

<llo_original>
// kernel: qaware_bert_output.1
$region0: #{qaware_bert_output.1}
  #allocation0 [shape = 'u32[]', space=smem, size = 0x4, offset = 0x4, fixed_abs, tag = 'smem constant byte address 0x4 - core index']
  #allocation1 [shape = 'u32[144,128]{1,0:T(1,128)}', space=vmem, size = 0x12000, scoped, tag = 'internal scratch']
  %s0 = inlined_call_operand.hbm [shape: f32[16,512], index: 0, kind: input, shape index: {}]
  %s1 = inlined_call_operand.hbm [shape: f32[512,128], index: 1, kind: input, shape index: {}]
  %s2 = inlined_call_operand.vmem [shape: f32[16,128], index: 2, kind: input, shape index: {}]
  %s3 = inlined_call_operand.vmem [shape: f32[3,128], index: 3, kind: input, shape index: {}]
  %s4 = inlined_call_operand.hbm [shape: f32[16,128], index: 4, kind: output, shape index: {}]
  %s5 = sld [smem:[#allocation0]]
  $region34: #{qaware_bert_output.1} parent=0
    _
  %s7 = ssub.s32 1, %s5
  %s8 = scalar_select 0, %s7, %s5
  $region1: #{qaware_bert_output.1} parent=0
    #allocation2 [shape = 'u8[32768]{0}', space=vmem, size = 0x8000, scoped, tag = 'input window, operand 0, single buffered']
    #allocation3 [shape = 's32[1]{0}', space=sflag, size = 0x4, scoped, tag = 'scoped memory for qaware_bert_output.1']
    #allocation4 [shape = 's32[1]{0}', space=sflag, size = 0x4, scoped, tag = 'scoped memory for qaware_bert_output.1']
    #allocation5 [shape = 'u8[262144]{0}', space=vmem, size = 0x40000, scoped, tag = 'input window, operand 1, single buffered']
    #allocation6 [shape = 's32[1]{0}', space=sflag, size = 0x4, scoped, tag = 'scoped memory for qaware_bert_output.1']
    #allocation7 [shape = 'u8[8192]{0}', space=vmem, size = 0x2000, scoped, tag = 'output window, operand 0, single buffered']
    %9 = vsyncpa [#allocation3], 0
    %10 = vsyncpa [#allocation6], 0
    %11 = vsyncpa [#allocation4], 0
    // Predicated region
    $region2: #{qaware_bert_output.1} parent=1 // pred_check
      _
    $region3: #{qaware_bert_output.1} parent=1 // pred_check_branch
      %13 = sbr.rel (0) target = $region5
    $region4: #{qaware_bert_output.1} parent=1 // pred_region
      %s15 = ssub.s32 1024, 1024
      %16 = vsyncadd [#allocation3], %s15
      %s17 = sshll.u32 [#allocation2], 4
      %s18 = int_to_ptr.vmem [resolvable:$true] %s17
      %23 = dma.hbm_to_vmem [thread:$0]  %s0, 1024, %s18, [#allocation3], 512, 512, 32
    $region5: #{qaware_bert_output.1} parent=1 // pred_fallthru
      _
    // Predicated region
    $region6: #{qaware_bert_output.1} parent=1 // pred_check
      _
    $region7: #{qaware_bert_output.1} parent=1 // pred_check_branch
      %25 = sbr.rel (0) target = $region9
    $region8: #{qaware_bert_output.1} parent=1 // pred_region
      %s27 = ssub.s32 8192, 8192
      %28 = vsyncadd [#allocation6], %s27
      %s29 = sshll.u32 [#allocation5], 4
      %s30 = int_to_ptr.vmem [resolvable:$true] %s29
      %35 = dma.hbm_to_vmem [thread:$0]  %s1, 8192, %s30, [#allocation6], 128, 128, 8
    $region9: #{qaware_bert_output.1} parent=1 // pred_fallthru
      _
    // Predicated region
    $region10: #{qaware_bert_output.1} parent=1 // pred_check
      _
    $region11: #{qaware_bert_output.1} parent=1 // pred_check_branch
      %37 = sbr.rel (0) target = $region13
    $region12: #{qaware_bert_output.1} parent=1 // pred_region
      _
    $region13: #{qaware_bert_output.1} parent=1 // pred_fallthru
      _
    // Predicated region
    $region14: #{qaware_bert_output.1} parent=1 // pred_check
      _
    $region15: #{qaware_bert_output.1} parent=1 // pred_check_branch
      %39 = sbr.rel (0) target = $region17
    $region16: #{qaware_bert_output.1} parent=1 // pred_region
      _
    $region17: #{qaware_bert_output.1} parent=1 // pred_fallthru
      _
    // Predicated region
    $region18: #{qaware_bert_output.1} parent=1 // pred_check
      _
    $region19: #{qaware_bert_output.1} parent=1 // pred_check_branch
      %41 = sbr.rel (0) target = $region21
    $region20: #{qaware_bert_output.1} parent=1 // pred_region
      %42 = dma.done [#allocation3], 1024
    $region21: #{qaware_bert_output.1} parent=1 // pred_fallthru
      _
    // Predicated region
    $region22: #{qaware_bert_output.1} parent=1 // pred_check
      _
    $region23: #{qaware_bert_output.1} parent=1 // pred_check_branch
      %44 = sbr.rel (0) target = $region25
    $region24: #{qaware_bert_output.1} parent=1 // pred_region
      %45 = dma.done [#allocation6], 8192
    $region25: #{qaware_bert_output.1} parent=1 // pred_fallthru
      _
    %v46 = vld [vmem:[#allocation2] sm:$0xff]
    %v47 = vld [vmem:[#allocation2 + $0x8] sm:$0xff]
    %v48 = vld [vmem:[#allocation2 + $0x10] sm:$0xff]
    %v49 = vld [vmem:[#allocation2 + $0x18] sm:$0xff]
    %v50 = vld [vmem:[#allocation2 + $0x20] sm:$0xff]
    %v51 = vld [vmem:[#allocation2 + $0x28] sm:$0xff]
    %v52 = vld [vmem:[#allocation2 + $0x30] sm:$0xff]
    %v53 = vld [vmem:[#allocation2 + $0x38] sm:$0xff]
    %v54 = vld [vmem:[#allocation5] sm:$0xff]
    %v55 = vld [vmem:[#allocation5 + $0x8] sm:$0xff]
    %v56 = vld [vmem:[#allocation5 + $0x10] sm:$0xff]
    %v57 = vld [vmem:[#allocation5 + $0x18] sm:$0xff]
    %v58 = vld [vmem:[#allocation5 + $0x20] sm:$0xff]
    %v59 = vld [vmem:[#allocation5 + $0x28] sm:$0xff]
    %v60 = vld [vmem:[#allocation5 + $0x30] sm:$0xff]
    %v61 = vld [vmem:[#allocation5 + $0x38] sm:$0xff]
    %v62 = vld [vmem:[#allocation5 + $0x40] sm:$0xff]
    %v63 = vld [vmem:[#allocation5 + $0x48] sm:$0xff]
    %v64 = vld [vmem:[#allocation5 + $0x50] sm:$0xff]
    %v65 = vld [vmem:[#allocation5 + $0x58] sm:$0xff]
    %v66 = vld [vmem:[#allocation5 + $0x60] sm:$0xff]
    %v67 = vld [vmem:[#allocation5 + $0x68] sm:$0xff]
    %v68 = vld [vmem:[#allocation5 + $0x70] sm:$0xff]
    %v69 = vld [vmem:[#allocation5 + $0x78] sm:$0xff]
    %v70 = vld [vmem:[#allocation5 + $0x80] sm:$0xff]
    %v71 = vld [vmem:[#allocation5 + $0x88] sm:$0xff]
    %v72 = vld [vmem:[#allocation5 + $0x90] sm:$0xff]
    %v73 = vld [vmem:[#allocation5 + $0x98] sm:$0xff]
    %v74 = vld [vmem:[#allocation5 + $0xa0] sm:$0xff]
    %v75 = vld [vmem:[#allocation5 + $0xa8] sm:$0xff]
    %v76 = vld [vmem:[#allocation5 + $0xb0] sm:$0xff]
    %v77 = vld [vmem:[#allocation5 + $0xb8] sm:$0xff]
    %v78 = vld [vmem:[#allocation5 + $0xc0] sm:$0xff]
    %v79 = vld [vmem:[#allocation5 + $0xc8] sm:$0xff]
    %v80 = vld [vmem:[#allocation5 + $0xd0] sm:$0xff]
    %v81 = vld [vmem:[#allocation5 + $0xd8] sm:$0xff]
    %v82 = vld [vmem:[#allocation5 + $0xe0] sm:$0xff]
    %v83 = vld [vmem:[#allocation5 + $0xe8] sm:$0xff]
    %v84 = vld [vmem:[#allocation5 + $0xf0] sm:$0xff]
    %v85 = vld [vmem:[#allocation5 + $0xf8] sm:$0xff]
    %v86 = vld [vmem:[#allocation5 + $0x100] sm:$0xff]
    %v87 = vld [vmem:[#allocation5 + $0x108] sm:$0xff]
    %v88 = vld [vmem:[#allocation5 + $0x110] sm:$0xff]
    %v89 = vld [vmem:[#allocation5 + $0x118] sm:$0xff]
    %v90 = vld [vmem:[#allocation5 + $0x120] sm:$0xff]
    %v91 = vld [vmem:[#allocation5 + $0x128] sm:$0xff]
    %v92 = vld [vmem:[#allocation5 + $0x130] sm:$0xff]
    %v93 = vld [vmem:[#allocation5 + $0x138] sm:$0xff]
    %v94 = vld [vmem:[#allocation5 + $0x140] sm:$0xff]
    %v95 = vld [vmem:[#allocation5 + $0x148] sm:$0xff]
    %v96 = vld [vmem:[#allocation5 + $0x150] sm:$0xff]
    %v97 = vld [vmem:[#allocation5 + $0x158] sm:$0xff]
    %v98 = vld [vmem:[#allocation5 + $0x160] sm:$0xff]
    %v99 = vld [vmem:[#allocation5 + $0x168] sm:$0xff]
    %v100 = vld [vmem:[#allocation5 + $0x170] sm:$0xff]
    %v101 = vld [vmem:[#allocation5 + $0x178] sm:$0xff]
    %v102 = vld [vmem:[#allocation5 + $0x180] sm:$0xff]
    %v103 = vld [vmem:[#allocation5 + $0x188] sm:$0xff]
    %v104 = vld [vmem:[#allocation5 + $0x190] sm:$0xff]
    %v105 = vld [vmem:[#allocation5 + $0x198] sm:$0xff]
    %v106 = vld [vmem:[#allocation5 + $0x1a0] sm:$0xff]
    %v107 = vld [vmem:[#allocation5 + $0x1a8] sm:$0xff]
    %v108 = vld [vmem:[#allocation5 + $0x1b0] sm:$0xff]
    %v109 = vld [vmem:[#allocation5 + $0x1b8] sm:$0xff]
    %v110 = vld [vmem:[#allocation5 + $0x1c0] sm:$0xff]
    %v111 = vld [vmem:[#allocation5 + $0x1c8] sm:$0xff]
    %v112 = vld [vmem:[#allocation5 + $0x1d0] sm:$0xff]
    %v113 = vld [vmem:[#allocation5 + $0x1d8] sm:$0xff]
    %v114 = vld [vmem:[#allocation5 + $0x1e0] sm:$0xff]
    %v115 = vld [vmem:[#allocation5 + $0x1e8] sm:$0xff]
    %v116 = vld [vmem:[#allocation5 + $0x1f0] sm:$0xff]
    %v117 = vld [vmem:[#allocation5 + $0x1f8] sm:$0xff]
    %v118 = vld [vmem:[%s3] sm:$0x1]
    %v119 = vld [vmem:[%s3 + $0x1] sm:$0x1]
    %v120 = vld [vmem:[%s3 + $0x2] sm:$0x1]
    %v121 = vlaneseq
    %v122 = vshrl.u32 %v121, 7
    %v123 = vsub.s32 0, %v122
    %v124 = vrot.slane %v118, %v123
    %125 = vmatprep.subr.mxu0 0.0
    %126 = vmatpush1.msra.mxu0 %v54
    %127 = vmatprep.subr.mxu0 0.0
    %128 = vmatpush1.msra.mxu0 %v55
    %129 = vmatprep.subr.mxu0 0.0
    %130 = vmatpush1.msra.mxu0 %v56
    %131 = vmatprep.subr.mxu0 0.0
    %132 = vmatpush1.msra.mxu0 %v57
    %133 = vmatprep.subr.mxu0 0.0
    %134 = vmatpush1.msra.mxu0 %v58
    %135 = vmatprep.subr.mxu0 0.0
    %136 = vmatpush1.msra.mxu0 %v59
    %137 = vmatprep.subr.mxu0 0.0
    %138 = vmatpush1.msra.mxu0 %v60
    %139 = vmatprep.subr.mxu0 0.0
    %140 = vmatpush1.msra.mxu0 %v61
    %141 = vmatprep.subr.mxu0 0.0
    %142 = vmatpush1.msra.mxu0 %v62
    %143 = vmatprep.subr.mxu0 0.0
    %144 = vmatpush1.msra.mxu0 %v63
    %145 = vmatprep.subr.mxu0 0.0
    %146 = vmatpush1.msra.mxu0 %v64
    %147 = vmatprep.subr.mxu0 0.0
    %148 = vmatpush1.msra.mxu0 %v65
    %149 = vmatprep.subr.mxu0 0.0
    %150 = vmatpush1.msra.mxu0 %v66
    %151 = vmatprep.subr.mxu0 0.0
    %152 = vmatpush1.msra.mxu0 %v67
    %153 = vmatprep.subr.mxu0 0.0
    %154 = vmatpush1.msra.mxu0 %v68
    %155 = vmatprep.subr.mxu0 0.0
    %156 = vmatpush1.msra.mxu0 %v69
    %157 = vmatprep.subr.mxu0 0.0
    %158 = vmatpush1.msra.mxu0 %v70
    %159 = vmatprep.subr.mxu0 0.0
    %160 = vmatpush1.msra.mxu0 %v71
    %161 = vmatprep.subr.mxu0 0.0
    %162 = vmatpush1.msra.mxu0 %v72
    %163 = vmatprep.subr.mxu0 0.0
    %164 = vmatpush1.msra.mxu0 %v73
    %165 = vmatprep.subr.mxu0 0.0
    %166 = vmatpush1.msra.mxu0 %v74
    %167 = vmatprep.subr.mxu0 0.0
    %168 = vmatpush1.msra.mxu0 %v75
    %169 = vmatprep.subr.mxu0 0.0
    %170 = vmatpush1.msra.mxu0 %v76
    %171 = vmatprep.subr.mxu0 0.0
    %172 = vmatpush1.msra.mxu0 %v77
    %173 = vmatprep.subr.mxu0 0.0
    %174 = vmatpush1.msra.mxu0 %v78
    %175 = vmatprep.subr.mxu0 0.0
    %176 = vmatpush1.msra.mxu0 %v79
    %177 = vmatprep.subr.mxu0 0.0
    %178 = vmatpush1.msra.mxu0 %v80
    %179 = vmatprep.subr.mxu0 0.0
    %180 = vmatpush1.msra.mxu0 %v81
    %181 = vmatprep.subr.mxu0 0.0
    %182 = vmatpush1.msra.mxu0 %v82
    %183 = vmatprep.subr.mxu0 0.0
    %184 = vmatpush1.msra.mxu0 %v83
    %185 = vmatprep.subr.mxu0 0.0
    %186 = vmatpush1.msra.mxu0 %v84
    %187 = vmatprep.subr.mxu0 0.0
    %188 = vmatpush1.msra.mxu0 %v85
    %189 = vmatprep.mubr.f32.mxu0 %v47
    %190 = vmatmul.mubr.f32.gmra.mrb[0].mxu0 %v46
    %v191 = vpop.f32.mrb[0].mxu0
    %v192 = vadd.f32 %v124, %v191
    %v193 = vpop.f32.mrb[0].mxu0
    %194 = vmatprep.mubr.f32.mxu0 %v51
    %195 = vmatmul.mubr.f32.gmra.mrb[0].mxu0 %v50
    %v196 = vpop.f32.mrb[0].mxu0
    %v197 = vadd.f32 %v124, %v196
    %v198 = vpop.f32.mrb[0].mxu0
    %199 = vdwg.mxu0
    %200 = vmatprep.subr.mxu0 0.0
    %201 = vmatpush1.msra.mxu0 %v86
    %202 = vmatprep.subr.mxu0 0.0
    %203 = vmatpush1.msra.mxu0 %v87
    %204 = vmatprep.subr.mxu0 0.0
    %205 = vmatpush1.msra.mxu0 %v88
    %206 = vmatprep.subr.mxu0 0.0
    %207 = vmatpush1.msra.mxu0 %v89
    %208 = vmatprep.subr.mxu0 0.0
    %209 = vmatpush1.msra.mxu0 %v90
    %210 = vmatprep.subr.mxu0 0.0
    %211 = vmatpush1.msra.mxu0 %v91
    %212 = vmatprep.subr.mxu0 0.0
    %213 = vmatpush1.msra.mxu0 %v92
    %214 = vmatprep.subr.mxu0 0.0
    %215 = vmatpush1.msra.mxu0 %v93
    %216 = vmatprep.subr.mxu0 0.0
    %217 = vmatpush1.msra.mxu0 %v94
    %218 = vmatprep.subr.mxu0 0.0
    %219 = vmatpush1.msra.mxu0 %v95
    %220 = vmatprep.subr.mxu0 0.0
    %221 = vmatpush1.msra.mxu0 %v96
    %222 = vmatprep.subr.mxu0 0.0
    %223 = vmatpush1.msra.mxu0 %v97
    %224 = vmatprep.subr.mxu0 0.0
    %225 = vmatpush1.msra.mxu0 %v98
    %226 = vmatprep.subr.mxu0 0.0
    %227 = vmatpush1.msra.mxu0 %v99
    %228 = vmatprep.subr.mxu0 0.0
    %229 = vmatpush1.msra.mxu0 %v100
    %230 = vmatprep.subr.mxu0 0.0
    %231 = vmatpush1.msra.mxu0 %v101
    %232 = vmatprep.subr.mxu0 0.0
    %233 = vmatpush1.msra.mxu0 %v102
    %234 = vmatprep.subr.mxu0 0.0
    %235 = vmatpush1.msra.mxu0 %v103
    %236 = vmatprep.subr.mxu0 0.0
    %237 = vmatpush1.msra.mxu0 %v104
    %238 = vmatprep.subr.mxu0 0.0
    %239 = vmatpush1.msra.mxu0 %v105
    %240 = vmatprep.subr.mxu0 0.0
    %241 = vmatpush1.msra.mxu0 %v106
    %242 = vmatprep.subr.mxu0 0.0
    %243 = vmatpush1.msra.mxu0 %v107
    %244 = vmatprep.subr.mxu0 0.0
    %245 = vmatpush1.msra.mxu0 %v108
    %246 = vmatprep.subr.mxu0 0.0
    %247 = vmatpush1.msra.mxu0 %v109
    %248 = vmatprep.subr.mxu0 0.0
    %249 = vmatpush1.msra.mxu0 %v110
    %250 = vmatprep.subr.mxu0 0.0
    %251 = vmatpush1.msra.mxu0 %v111
    %252 = vmatprep.subr.mxu0 0.0
    %253 = vmatpush1.msra.mxu0 %v112
    %254 = vmatprep.subr.mxu0 0.0
    %255 = vmatpush1.msra.mxu0 %v113
    %256 = vmatprep.subr.mxu0 0.0
    %257 = vmatpush1.msra.mxu0 %v114
    %258 = vmatprep.subr.mxu0 0.0
    %259 = vmatpush1.msra.mxu0 %v115
    %260 = vmatprep.subr.mxu0 0.0
    %261 = vmatpush1.msra.mxu0 %v116
    %262 = vmatprep.subr.mxu0 0.0
    %263 = vmatpush1.msra.mxu0 %v117
    %264 = vmatprep.mubr.f32.mxu0 %v49
    %265 = vmatmul.mubr.f32.gmra.mrb[0].mxu0 %v48
    %v266 = vpop.f32.mrb[0].mxu0
    %v267 = vadd.f32 %v192, %v266
    %v268 = vpop.f32.mrb[0].mxu0
    %269 = vmatprep.mubr.f32.mxu0 %v53
    %270 = vmatmul.mubr.f32.gmra.mrb[0].mxu0 %v52
    %v271 = vpop.f32.mrb[0].mxu0
    %v272 = vadd.f32 %v197, %v271
    %v273 = vpop.f32.mrb[0].mxu0
    %274 = vdwg.mxu0
    %v275 = vld [vmem:[%s2] sm:$0xff]
    %v276 = vld [vmem:[%s2 + $0x8] sm:$0xff]
    %v277 = vadd.f32 %v267, %v275
    %v278 = vadd.f32 %v272, %v276
    %v279 = vmul.f32 %v277, 20.0
    %v280 = vmul.f32 %v278, 20.0
    %v281 = vadd.f32 %v279, 0.0
    %v282 = vadd.f32 %v280, 0.0
    %v283 = vround.ne.pseudo %v281
    %v284 = vround.ne.pseudo %v282
    %v285 = vmax.f32 %v283, -128.0
    %v286 = vmax.f32 %v284, -128.0
    %v287 = vmin.f32 %v285, 127.0
    %v288 = vmin.f32 %v286, 127.0
    %v289 = vmul.f32 %v287, 0.05
    %v290 = vmul.f32 %v288, 0.05
    %291 = vadd.xlane.f32.xlu0 %v289
    %v292 = vpop.xlane.xlu0 %291
    %293 = vadd.xlane.f32.xlu0 %v290
    %v294 = vpop.xlane.xlu0 %293
    %v295 = vrcp.pop 128.0
    %v296 = vmul.f32 %v292, %v295
    %v297 = vmul.f32 %v294, %v295
    %v298 = vsub.f32 %v289, %v296
    %v299 = vsub.f32 %v290, %v297
    %v300 = vmul.f32 %v298, %v298
    %v301 = vmul.f32 %v299, %v299
    %302 = vadd.xlane.f32.xlu0 %v300
    %v303 = vpop.xlane.xlu0 %302
    %304 = vadd.xlane.f32.xlu0 %v301
    %v305 = vpop.xlane.xlu0 %304
    %v306 = vmul.f32 %v303, %v295
    %v307 = vmul.f32 %v305, %v295
    %v308 = vadd.f32 %v306, 1e-12
    %v309 = vadd.f32 %v307, 1e-12
    %v310 = vrsqrt.pop %v308
    %v311 = vrsqrt.pop %v309
    %v312 = vmul.f32 %v298, %v310
    %v313 = vmul.f32 %v299, %v311
    %v314 = vlaneseq
    %v315 = vshrl.u32 %v314, 7
    %v316 = vsub.s32 0, %v315
    %v317 = vrot.slane %v119, %v316
    %v318 = vmul.f32 %v312, %v317
    %v319 = vmul.f32 %v313, %v317
    %v320 = vlaneseq
    %v321 = vshrl.u32 %v320, 7
    %v322 = vsub.s32 0, %v321
    %v323 = vrot.slane %v120, %v322
    %v324 = vadd.f32 %v318, %v323
    %v325 = vadd.f32 %v319, %v323
    %326 = vst [vmem:[#allocation7] sm:$0xff] %v324
    %327 = vst [vmem:[#allocation7 + $0x8] sm:$0xff] %v325
    // Predicated region
    $region26: #{qaware_bert_output.1} parent=1 // pred_check
      _
    $region27: #{qaware_bert_output.1} parent=1 // pred_check_branch
      %329 = sbr.rel (0) target = $region29
    $region28: #{qaware_bert_output.1} parent=1 // pred_region
      %s331 = ssub.s32 256, 256
      %332 = vsyncadd [#allocation4], %s331
      %s333 = sshll.u32 [#allocation7], 4
      %s334 = int_to_ptr.vmem [resolvable:$true] %s333
      %339 = dma.vmem_to_hbm [thread:$0]  %s334, 256, %s4, [#allocation4], 128, 128, 8
    $region29: #{qaware_bert_output.1} parent=1 // pred_fallthru
      _
    // Predicated region
    $region30: #{qaware_bert_output.1} parent=1 // pred_check
      _
    $region31: #{qaware_bert_output.1} parent=1 // pred_check_branch
      %341 = sbr.rel (0) target = $region33
    $region32: #{qaware_bert_output.1} parent=1 // pred_region
      %342 = dma.done [#allocation4], 256
    $region33: #{qaware_bert_output.1} parent=1 // pred_fallthru
      _
    %343 = vsyncpa [#allocation3], 1
    %344 = vsyncpa [#allocation6], 1
    %345 = vsyncpa [#allocation4], 1

</llo_original>
